<compile_context>
chip_gen: v7x
topology: tpu7x:2x2x1
jax: 0.10.0
libtpu: 0.0.40
codegen_flags: <defaults>
</compile_context>

<pallas_src>
import jax
import jax.numpy as jnp
from jax.experimental import pallas as pl
from jax.experimental.pallas import tpu as pltpu

_VMEM_TILE_BUDGET = 16 * 1024 * 1024   # double-buffered block footprint (v7x-safe)
_VMEM_LIMIT_BYTES = 32 * 1024 * 1024   # explicit scoped-VMEM limit (headroom on all gens)


# --------------------------------------------------------------------------
# Kernel bodies
# --------------------------------------------------------------------------
def _even_lane_mask(d):
    """(1, d) boolean mask, True at even lanes; broadcast over sublanes is free."""
    lane = jax.lax.broadcasted_iota(jnp.int32, (1, d), 1)
    return (lane & 1) == 0


def _expand_trig(cs, even):
    """cs row [c0, s0, c1, s1, ...] -> cos_f=[c0,c0,c1,c1,...], sin_d=[s0,s0,s1,s1,...].

    pltpu.roll follows jnp.roll: roll(v, s)[j] = v[(j - s) % d]; wrap-around
    lanes are always discarded by the parity select.
    """
    d = cs.shape[-1]
    cs_next = pltpu.roll(cs, d - 1, 1)          # cs[j+1]
    cs_prev = pltpu.roll(cs, 1, 1)              # cs[j-1]
    cos_f = jnp.where(even, cs, cs_prev)
    sin_d = jnp.where(even, cs_next, cs)
    return cos_f, sin_d


def _pair_rotate(x2d, even):
    """Signed pair swap: out[2i] = -x[2i+1], out[2i+1] = x[2i] (sign folded in)."""
    d = x2d.shape[-1]
    x_next = pltpu.roll(x2d, d - 1, 1)          # x[j+1]
    x_prev = pltpu.roll(x2d, 1, 1)              # x[j-1]
    return jnp.where(even, -x_next, x_prev)


def _rope_kernel_rows(x_ref, cs_ref, o_ref):
    """Generic path: x_ref/o_ref (T, D) native dtype, cs_ref (T, D) per-row trig."""
    d = x_ref.shape[-1]
    even = _even_lane_mask(d)
    x = x_ref[...].astype(jnp.float32)
    cs = cs_ref[...].astype(jnp.float32)
    cos_f, sin_d = _expand_trig(cs, even)
    x_rot = _pair_rotate(x, even)
    # out[2i] = x[2i]*cos - x[2i+1]*sin ; out[2i+1] = x[2i]*sin + x[2i+1]*cos
    o_ref[...] = (x * cos_f + x_rot * sin_d).astype(o_ref.dtype)


def _rope_kernel_bcast(x_ref, cs_ref, o_ref):
    """Shared-positions path: x_ref/o_ref (t_b, t_s, D), cs_ref (t_s, D) resident."""
    tb, ts, d = x_ref.shape
    even = _even_lane_mask(d)
    cs = cs_ref[...].astype(jnp.float32)                      # (t_s, D)
    cos_f, sin_d = _expand_trig(cs, even)                     # (t_s, D)
    x = x_ref[...].astype(jnp.float32)                        # (t_b, t_s, D)
    # Lane rolls on a layout-preserving 2-D view (t_s is a multiple of 8 here).
    x_rot = _pair_rotate(x.reshape(tb * ts, d), even).reshape(tb, ts, d)
    o_ref[...] = (x * cos_f[None] + x_rot * sin_d[None]).astype(o_ref.dtype)


# --------------------------------------------------------------------------
# Tile selection
# --------------------------------------------------------------------------
def _pick_row_tile(n_rows, d, x_bytes, cs_bytes):
    """Largest row tile for the generic (per-row cs) path within the VMEM budget."""
    per_row = 2 * d * (2 * x_bytes + cs_bytes)       # x-in + out + cs, double-buffered
    cap = max(8, _VMEM_TILE_BUDGET // per_row)
    if n_rows >= 16:
        cap = min(cap, n_rows // 2)                  # >=2 grid steps (v7x megacore)
    for t in (8192, 4096, 2048, 1024, 512, 256, 128, 64, 32, 16, 8):
        if t <= cap and n_rows % t == 0:
            return t, False
    t = 8
    while t * 2 <= cap and t * 2 <= n_rows:
        t *= 2
    return t, True                                    # rare path: needs row padding


def _pick_bcast_tiles(b, s, d, x_bytes, cs_bytes):
    """(t_b, t_s) for the shared-positions path; assumes s % 8 == 0."""
    row_cost = d * 4 * x_bytes                        # x + out, double-buffered, per row
    cs_cost = d * 2 * cs_bytes                        # cs, double-buffered, per row
    cap_s = max(8, _VMEM_TILE_BUDGET // (row_cost + cs_cost))
    t_s = 8
    start = min(s, (cap_s // 8) * 8)
    for cand in range(start, 7, -8):
        if s % cand == 0:
            t_s = cand
            break
    rem = _VMEM_TILE_BUDGET - t_s * cs_cost
    cap_b = max(1, rem // (t_s * row_cost))
    t_b = 1
    for cand in range(min(b, cap_b), 0, -1):
        if b % cand == 0:
            t_b = cand
            break
    # Guarantee >=2 grid steps so both v7x TensorCores get work and the
    # DMA/compute pipeline overlaps on every generation.
    if (s // t_s) * (b // t_b) < 2:
        if b >= 2:
            for cand in range(b // 2, 0, -1):
                if b % cand == 0:
                    t_b = cand
                    break
        elif s >= 16:
            for cand in range((s // 2 // 8) * 8, 7, -8):
                if s % cand == 0:
                    t_s = cand
                    break
    return t_b, t_s


# --------------------------------------------------------------------------
# pallas_call wrappers
# --------------------------------------------------------------------------
def _rope_pallas_rows(x2d, cs2d):
    """Generic path: x2d (N, D) native dtype, cs2d (N, D) trig -> (N, D)."""
    n, d = x2d.shape
    t, need_pad = _pick_row_tile(n, d, x2d.dtype.itemsize, cs2d.dtype.itemsize)
    n_pad = n
    if need_pad:
        n_pad = ((n + t - 1) // t) * t
        x2d = jnp.pad(x2d, ((0, n_pad - n), (0, 0)))
        cs2d = jnp.pad(cs2d, ((0, n_pad - n), (0, 0)))

    blk = pl.BlockSpec((t, d), lambda i: (i, 0))
    out = pl.pallas_call(
        _rope_kernel_rows,
        out_shape=jax.ShapeDtypeStruct((n_pad, d), x2d.dtype),
        grid_spec=pltpu.PrefetchScalarGridSpec(
            num_scalar_prefetch=0,
            grid=(n_pad // t,),
            in_specs=[blk, blk],
            out_specs=blk,
        ),
        compiler_params=pltpu.CompilerParams(
            dimension_semantics=("parallel",),
            vmem_limit_bytes=_VMEM_LIMIT_BYTES,
        ),
    )(x2d, cs2d)
    return out[:n] if n_pad != n else out


def _rope_pallas_bcast(x3d, cs2d):
    """Shared-positions path: x3d (B, S, D) native dtype, cs2d (S, D) trig."""
    b, s, d = x3d.shape
    t_b, t_s = _pick_bcast_tiles(b, s, d, x3d.dtype.itemsize, cs2d.dtype.itemsize)
    grid = (s // t_s, b // t_b)                      # seq outer, batch inner
    x_spec = pl.BlockSpec((t_b, t_s, d), lambda i_s, i_b: (i_b, i_s, 0))
    # cs block index is constant across the inner batch axis -> stays VMEM-resident.
    cs_spec = pl.BlockSpec((t_s, d), lambda i_s, i_b: (i_s, 0))
    return pl.pallas_call(
        _rope_kernel_bcast,
        out_shape=jax.ShapeDtypeStruct((b, s, d), x3d.dtype),
        grid_spec=pltpu.PrefetchScalarGridSpec(
            num_scalar_prefetch=0,
            grid=grid,
            in_specs=[x_spec, cs_spec],
            out_specs=x_spec,
        ),
        compiler_params=pltpu.CompilerParams(
            dimension_semantics=("parallel", "arbitrary"),
            vmem_limit_bytes=_VMEM_LIMIT_BYTES,
        ),
    )(x3d, cs2d)


# --------------------------------------------------------------------------
# Module
# --------------------------------------------------------------------------
class RotaryPositionalEmbedding:
    """JAX/Pallas port of the PyTorch RotaryPositionalEmbedding module."""

    def __init__(self, theta: float, d_k: int, max_seq_len: int):
        if d_k % 2 != 0:
            raise ValueError("d_k must be even.")
        self.theta = float(theta)
        self.d_k = d_k
        self.max_seq_len = max_seq_len
        positions = jnp.arange(max_seq_len, dtype=jnp.float32)            # (M,)
        inv_freq = 1.0 / theta ** (
            jnp.arange(0, d_k, 2, dtype=jnp.float32) / d_k
        )                                                                  # (Dh,)
        freqs = positions[:, None] * inv_freq[None, :]                     # (M, Dh)
        self.sin_cached = jnp.sin(freqs)
        self.cos_cached = jnp.cos(freqs)
        # Single interleaved table: cs[:, 2i] = cos_i, cs[:, 2i+1] = sin_i.
        self.cs_cached = jnp.stack(
            (self.cos_cached, self.sin_cached), axis=-1
        ).reshape(max_seq_len, d_k)                                        # (M, D) f32
        # bf16 copy: streamed when x is bf16 (halves trig HBM traffic).
        self.cs_cached_bf16 = self.cs_cached.astype(jnp.bfloat16)

    def _table_for(self, dtype):
        return self.cs_cached_bf16 if dtype == jnp.bfloat16 else self.cs_cached

    def __call__(self, x: jnp.ndarray, token_positions: jnp.ndarray) -> jnp.ndarray:
        """
        x:               (..., seq_len, d_k)
        token_positions: (..., seq_len) int
        returns:         (..., seq_len, d_k), same dtype as x
        """
        *lead, s, d = x.shape
        if d != self.d_k:
            raise ValueError(f"last dim {d} != d_k {self.d_k}")
        token_positions = jnp.asarray(token_positions)
        table = self._table_for(x.dtype)

        b = 1
        for v in lead:
            b *= int(v)

        # Fast path: positions shared across all leading dims -> gather only an
        # (S, D) trig slab and keep it VMEM-resident across the batch grid axis.
        shared = (
            token_positions.ndim >= 1
            and token_positions.shape[-1] == s
            and all(int(v) == 1 for v in token_positions.shape[:-1])
        )
        if shared and s % 8 == 0:
            cs = table[token_positions.reshape(-1)]          # (S, D)
            out = _rope_pallas_bcast(x.reshape(b, s, d), cs)
            return out.reshape(*lead, s, d)

        # Generic path: positions differ across leading dims -> per-row gather.
        pos = jnp.broadcast_to(token_positions, (*lead, s))
        cs = table[pos.reshape(-1)]                          # (N, D)
        out2d = _rope_pallas_rows(x.reshape(b * s, d), cs)
        return out2d.reshape(*lead, s, d)


# --------------------------------------------------------------------------
# Reference & self-test
# --------------------------------------------------------------------------
def _reference_rope(x, token_positions, theta, d_k, max_seq_len):
    """Pure-JAX reference matching the PyTorch forward exactly (f32 trig)."""
    positions = jnp.arange(max_seq_len, dtype=jnp.float32)
    inv_freq = 1.0 / theta ** (jnp.arange(0, d_k, 2, dtype=jnp.float32) / d_k)
    freqs = positions[:, None] * inv_freq[None, :]
    sin = jnp.sin(freqs)[token_positions]
    cos = jnp.cos(freqs)[token_positions]
    *lead, S, D = x.shape
    xp = x.reshape(*lead, S, D // 2, 2)
    x1, x2 = xp[..., 0], xp[..., 1]
    r1 = x1 * cos - x2 * sin
    r2 = x1 * sin + x2 * cos
    return jnp.stack((r1, r2), axis=-1).reshape(*lead, S, D)


if __name__ == "__main__":
    theta = 10000.0
    d_k = 128
    max_seq_len = 32
    batch = 2
    heads = 3
    seq = 8

    key = jax.random.PRNGKey(0)
    kx, kp, kq = jax.random.split(key, 3)

    rope = RotaryPositionalEmbedding(theta=theta, d_k=d_k, max_seq_len=max_seq_len)

    # ---- Generic path: per-(batch, seq) random positions -------------------
    x = jax.random.normal(kx, (batch, seq, d_k), dtype=jnp.float32)
    tp = jax.random.randint(kp, (batch, seq), 0, max_seq_len)

    out = jax.block_until_ready(rope(x, tp))
    ref = _reference_rope(x, tp, theta, d_k, max_seq_len)
    assert out.shape == x.shape and out.dtype == x.dtype
    assert jnp.allclose(out, ref, atol=1e-5, rtol=1e-5)

    xb = x.astype(jnp.bfloat16)
    out_b = jax.block_until_ready(rope(xb, tp))
    ref_b = _reference_rope(xb.astype(jnp.float32), tp, theta, d_k, max_seq_len)
    assert out_b.shape == xb.shape and out_b.dtype == jnp.bfloat16
    assert jnp.allclose(out_b.astype(jnp.float32), ref_b, atol=5e-2, rtol=5e-2)

    # ---- Fast path: positions shared across batch*heads --------------------
    x4 = jax.random.normal(kq, (batch, heads, seq, d_k), dtype=jnp.float32)
    tp_shared = jax.random.randint(kp, (seq,), 0, max_seq_len)

    out4 = jax.block_until_ready(rope(x4, tp_shared))
    ref4 = _reference_rope(x4, tp_shared, theta, d_k, max_seq_len)
    assert out4.shape == x4.shape and out4.dtype == x4.dtype
    assert jnp.allclose(out4, ref4, atol=1e-5, rtol=1e-5)

    x4b = x4.astype(jnp.bfloat16)
    out4b = jax.block_until_ready(rope(x4b, tp_shared))
    ref4b = _reference_rope(x4b.astype(jnp.float32), tp_shared, theta, d_k, max_seq_len)
    assert out4b.shape == x4b.shape and out4b.dtype == jnp.bfloat16
    assert jnp.allclose(out4b.astype(jnp.float32), ref4b, atol=5e-2, rtol=5e-2)

    print("KERNEL_OK")
</pallas_src>

<mosaic_0001>
module attributes {stable_mosaic.version = 11 : i64} {
  func.func @_rope_kernel_rows(%arg0: i32, %arg1: memref<8x128xf32, #tpu.memory_space<vmem>>, %arg2: memref<8x128xf32, #tpu.memory_space<vmem>>, %arg3: memref<8x128xf32, #tpu.memory_space<vmem>>) attributes {dimension_semantics = [#tpu.dimension_semantics<parallel>], iteration_bounds = array<i64: 2>, scalar_prefetch = 0 : i64, scratch_operands = 0 : i64, tpu.core_type = #tpu.core_type<tc>, window_params = [{transform_indices = @transform_0, window_bounds = array<i64: 8, 128>}, {transform_indices = @transform_1, window_bounds = array<i64: 8, 128>}, {transform_indices = @transform_2, window_bounds = array<i64: 8, 128>}]} {
    %0 = tpu.iota {dimensions = array<i32: 1>} : vector<1x128xi32>
    %c1_i32 = arith.constant 1 : i32
    %1 = vector.broadcast %c1_i32 : i32 to vector<1x128xi32>
    %2 = arith.andi %0, %1 : vector<1x128xi32>
    %c0_i32 = arith.constant 0 : i32
    %3 = vector.broadcast %c0_i32 : i32 to vector<1x128xi32>
    %4 = arith.cmpi eq, %2, %3 : vector<1x128xi32>
    %c0 = arith.constant 0 : index
    %c0_0 = arith.constant 0 : index
    %5 = vector.load %arg1[%c0, %c0_0] : memref<8x128xf32, #tpu.memory_space<vmem>>, vector<8x128xf32>
    %c0_1 = arith.constant 0 : index
    %c0_2 = arith.constant 0 : index
    %6 = vector.load %arg2[%c0_1, %c0_2] : memref<8x128xf32, #tpu.memory_space<vmem>>, vector<8x128xf32>
    %c127_i32 = arith.constant 127 : i32
    %7 = tpu.dynamic_rotate %6 by %c127_i32 dim 1 : vector<8x128xf32>, i32 -> vector<8x128xf32>
    %c1_i32_3 = arith.constant 1 : i32
    %8 = tpu.dynamic_rotate %6 by %c1_i32_3 dim 1 : vector<8x128xf32>, i32 -> vector<8x128xf32>
    %9 = vector.shape_cast %4 : vector<1x128xi1> to vector<1x128xi1>
    %10 = vector.broadcast %9 : vector<1x128xi1> to vector<8x128xi1>
    %11 = arith.select %10, %6, %8 : vector<8x128xi1>, vector<8x128xf32>
    %12 = vector.shape_cast %4 : vector<1x128xi1> to vector<1x128xi1>
    %13 = vector.broadcast %12 : vector<1x128xi1> to vector<8x128xi1>
    %14 = arith.select %13, %7, %6 : vector<8x128xi1>, vector<8x128xf32>
    %c127_i32_4 = arith.constant 127 : i32
    %15 = tpu.dynamic_rotate %5 by %c127_i32_4 dim 1 : vector<8x128xf32>, i32 -> vector<8x128xf32>
    %c1_i32_5 = arith.constant 1 : i32
    %16 = tpu.dynamic_rotate %5 by %c1_i32_5 dim 1 : vector<8x128xf32>, i32 -> vector<8x128xf32>
    %cst = arith.constant 0.000000e+00 : f32
    %17 = vector.broadcast %cst : f32 to vector<8x128xf32>
    %18 = arith.subf %17, %15 : vector<8x128xf32>
    %19 = vector.shape_cast %4 : vector<1x128xi1> to vector<1x128xi1>
    %20 = vector.broadcast %19 : vector<1x128xi1> to vector<8x128xi1>
    %21 = arith.select %20, %18, %16 : vector<8x128xi1>, vector<8x128xf32>
    %22 = arith.mulf %5, %11 : vector<8x128xf32>
    %23 = arith.mulf %21, %14 : vector<8x128xf32>
    %24 = arith.addf %22, %23 : vector<8x128xf32>
    %c0_6 = arith.constant 0 : index
    %c0_7 = arith.constant 0 : index
    %25 = vector.load %arg3[%c0_6, %c0_7] : memref<8x128xf32, #tpu.memory_space<vmem>>, vector<8x128xf32>
    tpu.vector_store %arg3[%c0_6, %c0_7], %24 {strides = array<i32>} : memref<8x128xf32, #tpu.memory_space<vmem>>, vector<8x128xf32>,
    return
  }
  func.func @transform_0(%arg0: i32) -> (i32, i32) {
    %c0_i32 = arith.constant 0 : i32
    %c0_i32_0 = arith.constant 0 : i32
    return %arg0, %c0_i32 : i32, i32
  }
  func.func @transform_1(%arg0: i32) -> (i32, i32) {
    %c0_i32 = arith.constant 0 : i32
    %c0_i32_0 = arith.constant 0 : i32
    return %arg0, %c0_i32 : i32, i32
  }
  func.func @transform_2(%arg0: i32) -> (i32, i32) {
    %c0_i32 = arith.constant 0 : i32
    %c0_i32_0 = arith.constant 0 : i32
    return %arg0, %c0_i32 : i32, i32
  }
}

</mosaic_0001>

<llo_original>
// kernel: tpu_custom_call.1
$region0: #{tpu_custom_call.1}
  #allocation0 [shape = 'u32[]', space=smem, size = 0x4, offset = 0x4, fixed_abs, tag = 'smem constant byte address 0x4 - core index']
  #allocation1 [shape = 'u32[144,128]{1,0:T(1,128)}', space=vmem, size = 0x12000, scoped, tag = 'internal scratch']
  %s0 = inlined_call_operand.hbm [shape: f32[16,128], index: 0, kind: input, shape index: {}]
  %s1 = inlined_call_operand.hbm [shape: f32[16,128], index: 1, kind: input, shape index: {}]
  %s2 = inlined_call_operand.hbm [shape: f32[16,128], index: 2, kind: output, shape index: {}]
  %s3 = sld [smem:[#allocation0]]
  $region49: #{tpu_custom_call.1} parent=0
    _
  %s5 = ssub.s32 1, %s3
  %s6 = scalar_select 0, %s5, %s3
  $region1: #{tpu_custom_call.1} parent=0
    #allocation2 [shape = 'u8[8192]{0}', space=vmem, size = 0x2000, scoped, tag = 'input window, operand 0']
    #allocation3 [shape = 's32[2]{0}', space=sflag, size = 0x8, scoped, tag = 'scoped memory for tpu_custom_call.1']
    #allocation4 [shape = 's32[2]{0}', space=sflag, size = 0x8, scoped, tag = 'scoped memory for tpu_custom_call.1']
    #allocation5 [shape = 'u8[8192]{0}', space=vmem, size = 0x2000, scoped, tag = 'input window, operand 1']
    #allocation6 [shape = 's32[2]{0}', space=sflag, size = 0x8, scoped, tag = 'scoped memory for tpu_custom_call.1']
    #allocation7 [shape = 'u8[8192]{0}', space=vmem, size = 0x2000, scoped, tag = 'output window, operand 0']
    %7 = vsyncpa [#allocation3], 0
    %s8 = scalar_lea.sflag [#allocation3], 1
    %9 = vsyncpa %s8, 0
    %10 = vsyncpa [#allocation6], 0
    %s11 = scalar_lea.sflag [#allocation6], 1
    %12 = vsyncpa %s11, 0
    %13 = vsyncpa [#allocation4], 0
    %s14 = scalar_lea.sflag [#allocation4], 1
    %15 = vsyncpa %s14, 0
    loop: start=0, step=1, limit=4
    $region2: #{tpu_custom_call.1} parent=1 // loop_pre_header
      _
    $region3: #{tpu_custom_call.1} parent=1 // loop_header
      %s17 = sphi 0, %s21
      %p18 = scmp.ge.s32.totalorder %s17, 4
      %s27 = sphi 0, %s29
      %s30 = sphi 0, %s27
      %s31 = sphi 0, %s30
      %s47 = sphi 0, %s31
      %s53 = sphi 0, %s55
      %s56 = sphi 0, %s53
      %s57 = sphi 0, %s56
      %s73 = sphi 0, %s57
      %s79 = sphi 0, %s81
      %s82 = sphi 0, %s79
      %s83 = sphi 0, %s82
      %s99 = sphi 0, %s83
    $region4: #{tpu_custom_call.1} parent=1 // loop_header_branch
      %20 = sbr.rel (%p18) target = $region8
    $region5: #{tpu_custom_call.1} parent=1 // loop_body
      %s22 = ssub.s32 %s17, 1
      %s23 = ssub.s32 %s17, 2
      %s24 = sadd.s32 %s17, 1
      %s25 = ssub.s32 %s17, %s24
      %p26 = scmp.eq.s32.totalorder %s25, 0
      %s28 = sadd.s32 %s27, 1
      %s29 = scalar_select %p26, %s27, %s28
      %p32 = pneg %p26
      %p33 = scmp.eq.s32.totalorder %s17, 1
      %p34 = por %p32, %p33
      %p35 = scmp.ne.s32.totalorder %s27, %s30
      %p36 = scmp.eq.s32.totalorder %s17, 0
      %p37 = por %p35, %p36
      %p38 = scmp.ne.s32.totalorder %s27, %s30
      %p39 = scmp.eq.s32.totalorder %s22, 1
      %p40 = por %p38, %p39
      %p41 = scmp.ne.s32.totalorder %s30, %s31
      %p42 = scmp.eq.s32.totalorder %s22, 0
      %p43 = por %p41, %p42
      %p44 = scmp.ne.s32.totalorder %s30, %s31
      %p45 = scmp.eq.s32.totalorder %s23, 1
      %p46 = por %p44, %p45
      %p48 = scmp.ne.s32.totalorder %s31, %s47
      %p49 = scmp.eq.s32.totalorder %s23, 0
      %p50 = por %p48, %p49
      %s51 = ssub.s32 %s17, %s24
      %p52 = scmp.eq.s32.totalorder %s51, 0
      %s54 = sadd.s32 %s53, 1
      %s55 = scalar_select %p52, %s53, %s54
      %p58 = pneg %p52
      %p59 = scmp.eq.s32.totalorder %s17, 1
      %p60 = por %p58, %p59
      %p61 = scmp.ne.s32.totalorder %s53, %s56
      %p62 = scmp.eq.s32.totalorder %s17, 0
      %p63 = por %p61, %p62
      %p64 = scmp.ne.s32.totalorder %s53, %s56
      %p65 = scmp.eq.s32.totalorder %s22, 1
      %p66 = por %p64, %p65
      %p67 = scmp.ne.s32.totalorder %s56, %s57
      %p68 = scmp.eq.s32.totalorder %s22, 0
      %p69 = por %p67, %p68
      %p70 = scmp.ne.s32.totalorder %s56, %s57
      %p71 = scmp.eq.s32.totalorder %s23, 1
      %p72 = por %p70, %p71
      %p74 = scmp.ne.s32.totalorder %s57, %s73
      %p75 = scmp.eq.s32.totalorder %s23, 0
      %p76 = por %p74, %p75
      %s77 = ssub.s32 %s17, %s24
      %p78 = scmp.eq.s32.totalorder %s77, 0
      %s80 = sadd.s32 %s79, 1
      %s81 = scalar_select %p78, %s79, %s80
      %p84 = pneg %p78
      %p85 = scmp.eq.s32.totalorder %s17, 1
      %p86 = por %p84, %p85
      %p87 = scmp.ne.s32.totalorder %s79, %s82
      %p88 = scmp.eq.s32.totalorder %s17, 0
      %p89 = por %p87, %p88
      %p90 = scmp.ne.s32.totalorder %s79, %s82
      %p91 = scmp.eq.s32.totalorder %s22, 1
      %p92 = por %p90, %p91
      %p93 = scmp.ne.s32.totalorder %s82, %s83
      %p94 = scmp.eq.s32.totalorder %s22, 0
      %p95 = por %p93, %p94
      %p96 = scmp.ne.s32.totalorder %s82, %s83
      %p97 = scmp.eq.s32.totalorder %s23, 1
      %p98 = por %p96, %p97
      %p100 = scmp.ne.s32.totalorder %s83, %s99
      %p101 = scmp.eq.s32.totalorder %s23, 0
      %p102 = por %p100, %p101
      %p103 = scmp.le.s32.totalorder 1, %s17
      %p104 = scmp.lt.s32.totalorder %s17, 3
      %p105 = pnand %p103, %p104
      %p106 = pneg %p105
      // Predicated region
      $region9: #{tpu_custom_call.1} parent=5 // pred_check
        _
      $region10: #{tpu_custom_call.1} parent=5 // pred_check_branch
        %108 = sbr.rel (%p105) target = $region12
      $region11: #{tpu_custom_call.1} parent=5 // pred_region
        %s109 = ssub.s32 %s17, 1
      $region12: #{tpu_custom_call.1} parent=5 // pred_fallthru
        _
      %p110 = scmp.lt.s32.totalorder %s17, 2
      // Predicated region
      $region13: #{tpu_custom_call.1} parent=5 // pred_check
        %p111 = pneg %p110
      $region14: #{tpu_custom_call.1} parent=5 // pred_check_branch
        %113 = sbr.rel (%p111) target = $region16
      $region15: #{tpu_custom_call.1} parent=5 // pred_region
        // Predicated region
        $region17: #{tpu_custom_call.1} parent=15 // pred_check
          %p114 = pneg %p37
        $region18: #{tpu_custom_call.1} parent=15 // pred_check_branch
          %116 = sbr.rel (%p114) target = $region20
        $region19: #{tpu_custom_call.1} parent=15 // pred_region
          %s117 = sand.u32 %s27, 1
          %s118 = scalar_lea.sflag [#allocation3], %s117
          %s119 = sand.u32 %s27, 1
          %s120 = smul.addr %s119, 8
          %s121 = scalar_lea.vmem [#allocation2], %s120
          %s123 = ssub.s32 128, 128
          %124 = vsyncadd %s118, %s123
          %s125 = smul.addr %s17, 128
          %s126 = scalar_lea.hbm %s0, %s125
          %s128 = sshll.u32 %s121, 4
          %s129 = int_to_ptr.vmem [resolvable:$true] %s128
          %131 = dma.hbm_to_vmem [thread:$0]  %s126, 128, %s129, %s118
        $region20: #{tpu_custom_call.1} parent=15 // pred_fallthru
          _
        // Predicated region
        $region21: #{tpu_custom_call.1} parent=15 // pred_check
          %p132 = pneg %p63
        $region22: #{tpu_custom_call.1} parent=15 // pred_check_branch
          %134 = sbr.rel (%p132) target = $region24
        $region23: #{tpu_custom_call.1} parent=15 // pred_region
          %s135 = sand.u32 %s53, 1
          %s136 = scalar_lea.sflag [#allocation6], %s135
          %s137 = sand.u32 %s53, 1
          %s138 = smul.addr %s137, 8
          %s139 = scalar_lea.vmem [#allocation5], %s138
          %s141 = ssub.s32 128, 128
          %142 = vsyncadd %s136, %s141
          %s143 = smul.addr %s17, 128
          %s144 = scalar_lea.hbm %s1, %s143
          %s146 = sshll.u32 %s139, 4
          %s147 = int_to_ptr.vmem [resolvable:$true] %s146
          %149 = dma.hbm_to_vmem [thread:$0]  %s144, 128, %s147, %s136
        $region24: #{tpu_custom_call.1} parent=15 // pred_fallthru
          _
      $region16: #{tpu_custom_call.1} parent=5 // pred_fallthru
        _
      %p150 = scmp.le.s32.totalorder 1, %s17
      %p151 = scmp.lt.s32.totalorder %s17, 3
      %p152 = pnand %p150, %p151
      %p153 = pneg %p152
      // Predicated region
      $region25: #{tpu_custom_call.1} parent=5 // pred_check
        _
      $region26: #{tpu_custom_call.1} parent=5 // pred_check_branch
        %155 = sbr.rel (%p152) target = $region28
      $region27: #{tpu_custom_call.1} parent=5 // pred_region
        %s156 = ssub.s32 %s17, 1
        %s157 = sand.u32 %s30, 1
        %s158 = scalar_lea.sflag [#allocation3], %s157
        %s159 = sand.u32 %s30, 1
        %s160 = smul.addr %s159, 8
        %s161 = scalar_lea.vmem [#allocation2], %s160
        // Predicated region
        $region29: #{tpu_custom_call.1} parent=27 // pred_check
          %p162 = pneg %p43
        $region30: #{tpu_custom_call.1} parent=27 // pred_check_branch
          %164 = sbr.rel (%p162) target = $region32
        $region31: #{tpu_custom_call.1} parent=27 // pred_region
          %165 = dma.done %s158, 128
        $region32: #{tpu_custom_call.1} parent=27 // pred_fallthru
          _
        %s166 = sand.u32 %s56, 1
        %s167 = scalar_lea.sflag [#allocation6], %s166
        %s168 = sand.u32 %s56, 1
        %s169 = smul.addr %s168, 8
        %s170 = scalar_lea.vmem [#allocation5], %s169
        // Predicated region
        $region33: #{tpu_custom_call.1} parent=27 // pred_check
          %p171 = pneg %p69
        $region34: #{tpu_custom_call.1} parent=27 // pred_check_branch
          %173 = sbr.rel (%p171) target = $region36
        $region35: #{tpu_custom_call.1} parent=27 // pred_region
          %174 = dma.done %s167, 128
        $region36: #{tpu_custom_call.1} parent=27 // pred_fallthru
          _
        %s175 = sand.u32 %s30, 1
        %s176 = scalar_lea.sflag [#allocation3], %s175
        %s177 = sand.u32 %s30, 1
        %s178 = smul.addr %s177, 8
        %s179 = scalar_lea.vmem [#allocation2], %s178
        %p180 = pneg %p43
        %p181 = pneg %p40
        %s182 = sand.u32 %s56, 1
        %s183 = scalar_lea.sflag [#allocation6], %s182
        %s184 = sand.u32 %s56, 1
        %s185 = smul.addr %s184, 8
        %s186 = scalar_lea.vmem [#allocation5], %s185
        %p187 = pneg %p69
        %p188 = pneg %p66
        %p189 = pneg %p95
        %p190 = pneg %p92
        %s191 = sand.u32 %s82, 1
        %s192 = scalar_lea.sflag [#allocation4], %s191
        %s193 = sand.u32 %s82, 1
        %s194 = smul.addr %s193, 8
        %s195 = scalar_lea.vmem [#allocation7], %s194
        %v196 = vlaneseq
        %v197 = vand.u32 %v196, 127
        %v198 = vand.u32 %v197, 1
        %vm199 = vcmp.eq.s32.totalorder %v198, 0
        %v200 = vld [vmem:[%s161] sm:$0xff]
        %v201 = vld [vmem:[%s170] sm:$0xff]
        %202 = vrot.lane.b32.xlu0 %v201, 127
        %v203 = vpop.permute.xlu0 %202
        %204 = vrot.lane.b32.xlu0 %v201, 1
        %v205 = vpop.permute.xlu0 %204
        %v206 = vsel %vm199, 1, 0
        %vm207 = vcmp.eq.s32.totalorder %v206, 1
        %v208 = vsel %vm207, %v201, %v205
        %v209 = vsel %vm207, %v203, %v201
        %210 = vrot.lane.b32.xlu0 %v200, 127
        %v211 = vpop.permute.xlu0 %210
        %212 = vrot.lane.b32.xlu0 %v200, 1
        %v213 = vpop.permute.xlu0 %212
        %v214 = vsub.f32 0.0, %v211
        %v215 = vsel %vm207, %v214, %v213
        %v216 = vmul.f32 %v200, %v208
        %v217 = vmul.f32 %v215, %v209
        %v218 = vadd.f32 %v216, %v217
        %219 = vst [vmem:[%s195] sm:$0xff] %v218
        %s220 = sand.u32 %s82, 1
        %s221 = scalar_lea.sflag [#allocation4], %s220
        %s222 = sand.u32 %s82, 1
        %s223 = smul.addr %s222, 8
        %s224 = scalar_lea.vmem [#allocation7], %s223
        // Predicated region
        $region37: #{tpu_custom_call.1} parent=27 // pred_check
          %p225 = pneg %p92
        $region38: #{tpu_custom_call.1} parent=27 // pred_check_branch
          %227 = sbr.rel (%p225) target = $region40
        $region39: #{tpu_custom_call.1} parent=27 // pred_region
          %s229 = ssub.s32 128, 128
          %230 = vsyncadd %s221, %s229
          %s231 = smul.addr %s22, 128
          %s232 = scalar_lea.hbm %s2, %s231
          %s234 = sshll.u32 %s224, 4
          %s235 = int_to_ptr.vmem [resolvable:$true] %s234
          %237 = dma.vmem_to_hbm [thread:$0]  %s235, 128, %s232, %s221
        $region40: #{tpu_custom_call.1} parent=27 // pred_fallthru
          _
      $region28: #{tpu_custom_call.1} parent=5 // pred_fallthru
        _
      %p238 = scmp.le.s32.totalorder 2, %s17
      // Predicated region
      $region41: #{tpu_custom_call.1} parent=5 // pred_check
        %p239 = pneg %p238
      $region42: #{tpu_custom_call.1} parent=5 // pred_check_branch
        %241 = sbr.rel (%p239) target = $region44
      $region43: #{tpu_custom_call.1} parent=5 // pred_region
        %s242 = ssub.s32 %s17, 2
        // Predicated region
        $region45: #{tpu_custom_call.1} parent=43 // pred_check
          %p243 = pneg %p98
        $region46: #{tpu_custom_call.1} parent=43 // pred_check_branch
          %245 = sbr.rel (%p243) target = $region48
        $region47: #{tpu_custom_call.1} parent=43 // pred_region
          %s246 = sand.u32 %s83, 1
          %s247 = scalar_lea.sflag [#allocation4], %s246
          %s248 = sand.u32 %s83, 1
          %s249 = smul.addr %s248, 8
          %s250 = scalar_lea.vmem [#allocation7], %s249
          %251 = dma.done %s247, 128
        $region48: #{tpu_custom_call.1} parent=43 // pred_fallthru
          _
      $region44: #{tpu_custom_call.1} parent=5 // pred_fallthru
        _
    $region6: #{tpu_custom_call.1} parent=1 // loop_footer
      %s21 = sadd.s32 1, %s17
    $region7: #{tpu_custom_call.1} parent=1 // loop_footer_branch
      %16 = sbr.rel target = $region3
    $region8: #{tpu_custom_call.1} parent=1 // loop_exit
      _
    %252 = vsyncpa [#allocation3], 1
    %s253 = scalar_lea.sflag [#allocation3], 1
    %254 = vsyncpa %s253, 1
    %255 = vsyncpa [#allocation6], 1
    %s256 = scalar_lea.sflag [#allocation6], 1
    %257 = vsyncpa %s256, 1
    %258 = vsyncpa [#allocation4], 1
    %s259 = scalar_lea.sflag [#allocation4], 1
    %260 = vsyncpa %s259, 1

</llo_original>
